<compile_context>
chip_gen: v7x
topology: tpu7x:2x2x1
jax: 0.10.0
libtpu: 0.0.40
codegen_flags: <defaults>
</compile_context>

<pallas_src>
import functools

import numpy as np

import jax
import jax.numpy as jnp
from jax.experimental import pallas as pl
from jax.experimental.pallas import tpu as pltpu

KSIZE = 7          # SpatialAttention conv kernel size
PAD = KSIZE // 2   # "same" padding


def _choose_batch_tile(B):
    """Largest Bt <= 8 that divides B while leaving >= 2 grid steps."""
    best = 1
    for bt in range(2, min(8, B // 2) + 1):
        if B % bt == 0:
            best = bt
    return best


def _vmem_capacity_bytes():
    try:
        cap = getattr(pltpu.get_tpu_info(), "vmem_capacity_bytes", None)
        if cap:
            return int(cap)
    except Exception:
        pass
    return 64 << 20    # v7x per-TensorCore VMEM (smallest of v5e/v6e/v7x)


def _build_conv_matrix(wsa_oihw, H, W):
    """(2*H*W, H*W) matrix M s.t. maps(1, 2*HW) @ M == 7x7 'same' conv output.

    Rows [0, HW) correspond to the avg map, rows [HW, 2*HW) to the max map;
    zero padding at the image border is baked in as zero entries.
    """
    K = wsa_oihw.shape[-1]
    pad = K // 2
    HW = H * W
    w = np.asarray(jax.device_get(wsa_oihw), dtype=np.float32).reshape(2, K, K)
    m = np.zeros((2 * HW, HW), dtype=np.float32)
    for qy in range(H):
        for qx in range(W):
            q = qy * W + qx
            for ky in range(K):
                py = qy + ky - pad
                if py < 0 or py >= H:
                    continue
                for kx in range(K):
                    px = qx + kx - pad
                    if px < 0 or px >= W:
                        continue
                    p = py * W + px
                    m[p, q] = w[0, ky, kx]          # avg channel
                    m[HW + p, q] = w[1, ky, kx]     # max channel
    return jnp.asarray(m)


def _csattention_kernel(x_ref, w1_ref, w2_ref, cmat_ref, scale_ref, bias_ref,
                        out_ref, *, bt):
    """One batch tile of `bt` images per grid step.

    x_ref:     (bt, C, HW) VMEM   (NCHW, spatial dims flattened onto lanes)
    w1_ref:    (Cr, C)     VMEM   (fc1 of channel-attention MLP, PyTorch OI)
    w2_ref:    (C, Cr)     VMEM   (fc2 of channel-attention MLP, PyTorch OI)
    cmat_ref:  (2*HW, HW)  VMEM   (7x7 conv as a Toeplitz matrix, pad baked in)
    scale_ref: (C, 1)      VMEM   (folded BatchNorm scale)
    bias_ref:  (C, 1)      VMEM   (folded BatchNorm bias)
    out_ref:   (bt, C, HW) VMEM
    """
    # ---- Pass 1: per-channel avg/max of every image, packed on lanes -------
    cols = []
    for b in range(bt):
        xb = x_ref[b].astype(jnp.float32)                     # (C, HW)
        cols.append(jnp.mean(xb, axis=1, keepdims=True))      # (C, 1)
        cols.append(jnp.max(xb, axis=1, keepdims=True))       # (C, 1)
    stats = jnp.concatenate(cols, axis=1)                     # (C, 2*bt)

    # ---- Channel-attention MLP (CBAM shared MLP), one pass per tile --------
    h = jnp.dot(w1_ref[...], stats,
                preferred_element_type=jnp.float32)           # (Cr, 2*bt)
    h = jnp.maximum(h, 0.0)
    z = jnp.dot(w2_ref[...], h,
                preferred_element_type=jnp.float32)           # (C, 2*bt)

    cmat = cmat_ref[...]                                      # (2*HW, HW)
    scale = scale_ref[...]                                    # (C, 1)
    bias = bias_ref[...]                                      # (C, 1)

    # ---- Pass 2: apply channel + spatial attention, BN, ReLU per image -----
    for b in range(bt):
        xb = x_ref[b].astype(jnp.float32)                     # (C, HW)
        # Columns 2b / 2b+1 of z are fc2(relu(fc1(avg_b))) / same for max_b.
        ca = jax.nn.sigmoid(z[:, 2 * b:2 * b + 1]
                            + z[:, 2 * b + 1:2 * b + 2])      # (C, 1)
        yb = xb * ca                                          # (C, HW)

        # Spatial attention: 7x7 "same" conv over [mean_c | max_c], realized
        # as a single MXU matmul against the precomputed Toeplitz matrix.
        avg_sp = jnp.mean(yb, axis=0, keepdims=True)          # (1, HW)
        max_sp = jnp.max(yb, axis=0, keepdims=True)           # (1, HW)
        maps = jnp.concatenate([avg_sp, max_sp], axis=1)      # (1, 2*HW)
        s_pre = jnp.dot(maps, cmat,
                        preferred_element_type=jnp.float32)   # (1, HW)
        yb = yb * jax.nn.sigmoid(s_pre)                       # sublane bcast

        # BatchNorm (inference, folded running stats) + ReLU.
        yb = yb * scale + bias
        out_ref[b] = jnp.maximum(yb, 0.0).astype(out_ref.dtype)


def cs_attention(x_nchw, w_fc1, w_fc2, wsa_oihw, scale, bias):
    """x_nchw: (B, C, H, W), f32 or bf16. Returns (B, C, H, W), same dtype."""
    B, C, H, W = x_nchw.shape
    HW = H * W
    Cr = w_fc1.shape[0]
    io_dtype = x_nchw.dtype

    bt = _choose_batch_tile(B)
    grid = (B // bt,)

    # Free reshape (merges contiguous minor dims) -- no HBM transpose pass.
    x = x_nchw.reshape(B, C, HW)

    # 7x7 conv -> (2*HW, HW) Toeplitz matrix (weights + zero padding baked in).
    cmat = _build_conv_matrix(wsa_oihw, H, W)

    # VMEM budget derived from hardware (v7x = 64 MiB/TC) instead of a fixed
    # v5e/v6e-only ceiling; leave headroom for internal scratch.
    block_bytes = bt * C * HW * x.dtype.itemsize
    need = 4 * block_bytes + 2 * int(cmat.size) * 4 + (8 << 20)
    vmem_cap = _vmem_capacity_bytes()
    vmem_limit = int(max(16 << 20,
                         min(vmem_cap - (8 << 20), max(32 << 20, need))))

    kernel = functools.partial(_csattention_kernel, bt=bt)

    out = pl.pallas_call(
        kernel,
        out_shape=jax.ShapeDtypeStruct((B, C, HW), io_dtype),
        grid_spec=pltpu.PrefetchScalarGridSpec(
            num_scalar_prefetch=0,
            grid=grid,
            in_specs=[
                pl.BlockSpec((bt, C, HW), lambda b: (b, 0, 0)),
                pl.BlockSpec((Cr, C), lambda b: (0, 0)),
                pl.BlockSpec((C, Cr), lambda b: (0, 0)),
                pl.BlockSpec((2 * HW, HW), lambda b: (0, 0)),
                pl.BlockSpec((C, 1), lambda b: (0, 0)),
                pl.BlockSpec((C, 1), lambda b: (0, 0)),
            ],
            out_specs=pl.BlockSpec((bt, C, HW), lambda b: (b, 0, 0)),
        ),
        compiler_params=pltpu.CompilerParams(
            dimension_semantics=("parallel",),
            vmem_limit_bytes=vmem_limit,
        ),
    )(x,
      jnp.asarray(w_fc1, jnp.float32),
      jnp.asarray(w_fc2, jnp.float32),
      cmat,
      jnp.asarray(scale, jnp.float32).reshape(C, 1),
      jnp.asarray(bias, jnp.float32).reshape(C, 1))

    return out.reshape(B, C, H, W)


def _reference(x, w_fc1, w_fc2, wsa_oihw, scale, bias):
    """Pure-JAX reference of the pattern=0 CSAttention forward (NCHW, f32)."""
    hp = jax.lax.Precision.HIGHEST
    avg = jnp.mean(x, axis=(2, 3))
    mx = jnp.max(x, axis=(2, 3))

    def mlp(v):  # v: (B, C); w_fc1: (Cr, C); w_fc2: (C, Cr)
        h = jnp.maximum(jnp.einsum("bc,rc->br", v, w_fc1, precision=hp), 0.0)
        return jnp.einsum("br,cr->bc", h, w_fc2, precision=hp)

    ca = jax.nn.sigmoid(mlp(avg) + mlp(mx))                  # (B, C)
    y = x * ca[:, :, None, None]

    avg_sp = jnp.mean(y, axis=1, keepdims=True)
    max_sp = jnp.max(y, axis=1, keepdims=True)
    s_in = jnp.concatenate([avg_sp, max_sp], axis=1)         # (B, 2, H, W)
    s = jax.lax.conv_general_dilated(
        s_in, wsa_oihw, (1, 1), ((PAD, PAD), (PAD, PAD)),
        dimension_numbers=("NCHW", "OIHW", "NCHW"), precision=hp)
    s = jax.nn.sigmoid(s)                                    # (B, 1, H, W)
    y = y * s
    y = y * scale[None, :, None, None] + bias[None, :, None, None]
    return jnp.maximum(y, 0.0)


if __name__ == "__main__":
    ratio = 8
    eps = 1e-5

    def make_inputs(B, C, H, W):
        Cr = max(1, C // ratio)
        ks = jax.random.split(jax.random.PRNGKey(0), 8)
        x = jax.random.normal(ks[0], (B, C, H, W), jnp.float32)
        # Channel-attention MLP (Conv2d 1x1, bias=False) weights, PyTorch OI.
        w_fc1 = jax.random.normal(ks[1], (Cr, C), jnp.float32) * 0.1
        w_fc2 = jax.random.normal(ks[2], (C, Cr), jnp.float32) * 0.1
        # SpatialAttention conv: Conv2d(2, 1, 7, padding=3, bias=False), OIHW.
        wsa = jax.random.normal(ks[3], (1, 2, KSIZE, KSIZE), jnp.float32) * 0.1
        # BatchNorm2d parameters / running stats (inference mode, folded).
        gamma = 1.0 + 0.1 * jax.random.normal(ks[4], (C,), jnp.float32)
        beta = 0.1 * jax.random.normal(ks[5], (C,), jnp.float32)
        run_mean = 0.1 * jax.random.normal(ks[6], (C,), jnp.float32)
        run_var = 1.0 + 0.1 * jnp.abs(
            jax.random.normal(ks[7], (C,), jnp.float32))
        inv_std = 1.0 / jnp.sqrt(run_var + eps)
        scale = gamma * inv_std
        bias = beta - run_mean * gamma * inv_std
        return x, w_fc1, w_fc2, wsa, scale, bias

    C, H, W = 16, 16, 16

    # ---- f32, B=2 (Bt=1, grid=(2,)) ----------------------------------------
    B = 2
    x, w_fc1, w_fc2, wsa, scale, bias = make_inputs(B, C, H, W)
    out = jax.block_until_ready(cs_attention(x, w_fc1, w_fc2, wsa, scale, bias))
    ref = _reference(x, w_fc1, w_fc2, wsa, scale, bias)
    err = float(jnp.max(jnp.abs(out - ref)))
    assert out.shape == (B, C, H, W)
    assert jnp.isfinite(out).all()
    assert err < 2e-2, f"f32 (B=2) mismatch vs reference: {err}"

    # ---- f32, B=16 (Bt=8, grid=(2,)): exercises the batched-tile path ------
    B = 16
    x, w_fc1, w_fc2, wsa, scale, bias = make_inputs(B, C, H, W)
    out = jax.block_until_ready(cs_attention(x, w_fc1, w_fc2, wsa, scale, bias))
    ref = _reference(x, w_fc1, w_fc2, wsa, scale, bias)
    err = float(jnp.max(jnp.abs(out - ref)))
    assert out.shape == (B, C, H, W)
    assert err < 2e-2, f"f32 (B=16) mismatch vs reference: {err}"

    # ---- bf16 HBM I/O (compute stays f32 inside the kernel) ----------------
    x_bf16 = x.astype(jnp.bfloat16)
    out_bf = jax.block_until_ready(
        cs_attention(x_bf16, w_fc1, w_fc2, wsa, scale, bias))
    ref_bf = _reference(x_bf16.astype(jnp.float32), w_fc1, w_fc2, wsa,
                        scale, bias)
    err_bf = float(jnp.max(jnp.abs(out_bf.astype(jnp.float32) - ref_bf)))
    assert out_bf.dtype == jnp.bfloat16
    assert jnp.isfinite(out_bf.astype(jnp.float32)).all()
    assert err_bf < 1e-1, f"bf16 mismatch vs reference: {err_bf}"

    print("KERNEL_OK")
</pallas_src>

<mosaic_0001>
module attributes {stable_mosaic.version = 11 : i64} {
  func.func @_csattention_kernel(%arg0: i32, %arg1: memref<1x16x256xf32, #tpu.memory_space<vmem>>, %arg2: memref<2x16xf32, #tpu.memory_space<vmem>>, %arg3: memref<16x2xf32, #tpu.memory_space<vmem>>, %arg4: memref<512x256xf32, #tpu.memory_space<vmem>>, %arg5: memref<16x1xf32, #tpu.memory_space<vmem>>, %arg6: memref<16x1xf32, #tpu.memory_space<vmem>>, %arg7: memref<1x16x256xf32, #tpu.memory_space<vmem>>) attributes {dimension_semantics = [#tpu.dimension_semantics<parallel>], iteration_bounds = array<i64: 2>, scalar_prefetch = 0 : i64, scratch_operands = 0 : i64, tpu.core_type = #tpu.core_type<tc>, window_params = [{transform_indices = @transform_0, window_bounds = array<i64: 1, 16, 256>}, {pipeline_mode = #tpu.pipeline_mode<synchronous>, transform_indices = @transform_1, window_bounds = array<i64: 2, 16>}, {pipeline_mode = #tpu.pipeline_mode<synchronous>, transform_indices = @transform_2, window_bounds = array<i64: 16, 2>}, {pipeline_mode = #tpu.pipeline_mode<synchronous>, transform_indices = @transform_3, window_bounds = array<i64: 512, 256>}, {pipeline_mode = #tpu.pipeline_mode<synchronous>, transform_indices = @transform_4, window_bounds = array<i64: 16, 1>}, {pipeline_mode = #tpu.pipeline_mode<synchronous>, transform_indices = @transform_5, window_bounds = array<i64: 16, 1>}, {transform_indices = @transform_6, window_bounds = array<i64: 1, 16, 256>}]} {
    %c0 = arith.constant 0 : index
    %c0_0 = arith.constant 0 : index
    %c0_1 = arith.constant 0 : index
    %0 = vector.load %arg1[%c0, %c0_0, %c0_1] : memref<1x16x256xf32, #tpu.memory_space<vmem>>, vector<1x16x256xf32>
    %1 = vector.shape_cast %0 : vector<1x16x256xf32> to vector<16x256xf32>
    %cst = arith.constant dense<0.000000e+00> : vector<16xf32>
    %2 = vector.multi_reduction <add>, %1, %cst [1] : vector<16x256xf32> to vector<16xf32>
    %3 = vector.shape_cast %2 : vector<16xf32> to vector<16x1xf32>
    %cst_2 = arith.constant 2.560000e+02 : f32
    %4 = vector.broadcast %cst_2 : f32 to vector<16x1xf32>
    %5 = arith.divf %3, %4 : vector<16x1xf32>
    %cst_3 = arith.constant dense<0xFF800000> : vector<16xf32>
    %6 = vector.multi_reduction <maximumf>, %1, %cst_3 [1] : vector<16x256xf32> to vector<16xf32>
    %7 = vector.shape_cast %6 : vector<16xf32> to vector<16x1xf32>
    %8 = tpu.concatenate %5, %7 in 1 : vector<16x1xf32>, vector<16x1xf32> -> vector<16x2xf32>
    %c0_4 = arith.constant 0 : index
    %c0_5 = arith.constant 0 : index
    %9 = vector.load %arg2[%c0_4, %c0_5] : memref<2x16xf32, #tpu.memory_space<vmem>>, vector<2x16xf32>
    %cst_6 = arith.constant dense<0.000000e+00> : vector<2x2xf32>
    %10 = tpu.matmul %9, %8, %cst_6 {dimension_numbers = #tpu.dot_dimension_numbers<[1], [0], [0], [1], [0, 0, 1, 1], [], []>} : vector<2x16xf32>, vector<16x2xf32>, vector<2x2xf32> -> vector<2x2xf32>
    %cst_7 = arith.constant 0.000000e+00 : f32
    %11 = vector.broadcast %cst_7 : f32 to vector<2x2xf32>
    %12 = arith.maximumf %10, %11 : vector<2x2xf32>
    %c0_8 = arith.constant 0 : index
    %c0_9 = arith.constant 0 : index
    %13 = vector.load %arg3[%c0_8, %c0_9] : memref<16x2xf32, #tpu.memory_space<vmem>>, vector<16x2xf32>
    %cst_10 = arith.constant dense<0.000000e+00> : vector<16x2xf32>
    %14 = tpu.matmul %13, %12, %cst_10 {dimension_numbers = #tpu.dot_dimension_numbers<[1], [0], [0], [1], [0, 0, 1, 1], [], []>} : vector<16x2xf32>, vector<2x2xf32>, vector<16x2xf32> -> vector<16x2xf32>
    %c0_11 = arith.constant 0 : index
    %c0_12 = arith.constant 0 : index
    %15 = vector.load %arg4[%c0_11, %c0_12] : memref<512x256xf32, #tpu.memory_space<vmem>>, vector<512x256xf32>
    %c0_13 = arith.constant 0 : index
    %c0_14 = arith.constant 0 : index
    %16 = vector.load %arg5[%c0_13, %c0_14] : memref<16x1xf32, #tpu.memory_space<vmem>>, vector<16x1xf32>
    %c0_15 = arith.constant 0 : index
    %c0_16 = arith.constant 0 : index
    %17 = vector.load %arg6[%c0_15, %c0_16] : memref<16x1xf32, #tpu.memory_space<vmem>>, vector<16x1xf32>
    %c0_17 = arith.constant 0 : index
    %c0_18 = arith.constant 0 : index
    %c0_19 = arith.constant 0 : index
    %18 = vector.load %arg1[%c0_17, %c0_18, %c0_19] : memref<1x16x256xf32, #tpu.memory_space<vmem>>, vector<1x16x256xf32>
    %19 = vector.shape_cast %18 : vector<1x16x256xf32> to vector<16x256xf32>
    %20 = vector.extract_strided_slice %14 {offsets = [0, 0], sizes = [16, 1], strides = [1, 1]} : vector<16x2xf32> to vector<16x1xf32>
    %21 = vector.extract_strided_slice %14 {offsets = [0, 1], sizes = [16, 1], strides = [1, 1]} : vector<16x2xf32> to vector<16x1xf32>
    %22 = arith.addf %20, %21 : vector<16x1xf32>
    %23 = arith.negf %22 : vector<16x1xf32>
    %24 = math.exp %23 : vector<16x1xf32>
    %cst_20 = arith.constant 1.000000e+00 : f32
    %25 = vector.broadcast %cst_20 : f32 to vector<16x1xf32>
    %26 = arith.addf %25, %24 : vector<16x1xf32>
    %27 = arith.divf %25, %26 : vector<16x1xf32>
    %28 = vector.broadcast %27 : vector<16x1xf32> to vector<16x256xf32>
    %29 = arith.mulf %19, %28 : vector<16x256xf32>
    %cst_21 = arith.constant dense<0.000000e+00> : vector<256xf32>
    %30 = vector.multi_reduction <add>, %29, %cst_21 [0] : vector<16x256xf32> to vector<256xf32>
    %31 = vector.shape_cast %30 : vector<256xf32> to vector<1x256xf32>
    %cst_22 = arith.constant 1.600000e+01 : f32
    %32 = vector.broadcast %cst_22 : f32 to vector<1x256xf32>
    %33 = arith.divf %31, %32 : vector<1x256xf32>
    %cst_23 = arith.constant dense<0xFF800000> : vector<256xf32>
    %34 = vector.multi_reduction <maximumf>, %29, %cst_23 [0] : vector<16x256xf32> to vector<256xf32>
    %35 = vector.shape_cast %34 : vector<256xf32> to vector<1x256xf32>
    %36 = tpu.concatenate %33, %35 in 1 : vector<1x256xf32>, vector<1x256xf32> -> vector<1x512xf32>
    %cst_24 = arith.constant dense<0.000000e+00> : vector<1x256xf32>
    %37 = tpu.matmul %36, %15, %cst_24 {dimension_numbers = #tpu.dot_dimension_numbers<[1], [0], [0], [1], [0, 0, 1, 1], [], []>} : vector<1x512xf32>, vector<512x256xf32>, vector<1x256xf32> -> vector<1x256xf32>
    %38 = arith.negf %37 : vector<1x256xf32>
    %39 = math.exp %38 : vector<1x256xf32>
    %cst_25 = arith.constant 1.000000e+00 : f32
    %40 = vector.broadcast %cst_25 : f32 to vector<1x256xf32>
    %41 = arith.addf %40, %39 : vector<1x256xf32>
    %42 = arith.divf %40, %41 : vector<1x256xf32>
    %43 = vector.broadcast %42 : vector<1x256xf32> to vector<16x256xf32>
    %44 = arith.mulf %29, %43 : vector<16x256xf32>
    %45 = vector.broadcast %16 : vector<16x1xf32> to vector<16x256xf32>
    %46 = arith.mulf %44, %45 : vector<16x256xf32>
    %47 = vector.broadcast %17 : vector<16x1xf32> to vector<16x256xf32>
    %48 = arith.addf %46, %47 : vector<16x256xf32>
    %cst_26 = arith.constant 0.000000e+00 : f32
    %49 = vector.broadcast %cst_26 : f32 to vector<16x256xf32>
    %50 = arith.maximumf %48, %49 : vector<16x256xf32>
    %c0_27 = arith.constant 0 : index
    %c0_28 = arith.constant 0 : index
    %c0_29 = arith.constant 0 : index
    %51 = vector.load %arg7[%c0_27, %c0_28, %c0_29] : memref<1x16x256xf32, #tpu.memory_space<vmem>>, vector<1x16x256xf32>
    %52 = vector.shape_cast %51 : vector<1x16x256xf32> to vector<16x256xf32>
    %53 = vector.shape_cast %50 : vector<16x256xf32> to vector<1x16x256xf32>
    tpu.vector_store %arg7[%c0_27, %c0_28, %c0_29], %53 {strides = array<i32>} : memref<1x16x256xf32, #tpu.memory_space<vmem>>, vector<1x16x256xf32>,
    return
  }
  func.func @transform_0(%arg0: i32) -> (i32, i32, i32) {
    %c0_i32 = arith.constant 0 : i32
    %c0_i32_0 = arith.constant 0 : i32
    %c0_i32_1 = arith.constant 0 : i32
    return %arg0, %c0_i32, %c0_i32_0 : i32, i32, i32
  }
  func.func @transform_1(%arg0: i32) -> (i32, i32) {
    %c0_i32 = arith.constant 0 : i32
    %c0_i32_0 = arith.constant 0 : i32
    %c0_i32_1 = arith.constant 0 : i32
    return %c0_i32, %c0_i32_0 : i32, i32
  }
  func.func @transform_2(%arg0: i32) -> (i32, i32) {
    %c0_i32 = arith.constant 0 : i32
    %c0_i32_0 = arith.constant 0 : i32
    %c0_i32_1 = arith.constant 0 : i32
    return %c0_i32, %c0_i32_0 : i32, i32
  }
  func.func @transform_3(%arg0: i32) -> (i32, i32) {
    %c0_i32 = arith.constant 0 : i32
    %c0_i32_0 = arith.constant 0 : i32
    %c0_i32_1 = arith.constant 0 : i32
    return %c0_i32, %c0_i32_0 : i32, i32
  }
  func.func @transform_4(%arg0: i32) -> (i32, i32) {
    %c0_i32 = arith.constant 0 : i32
    %c0_i32_0 = arith.constant 0 : i32
    %c0_i32_1 = arith.constant 0 : i32
    return %c0_i32, %c0_i32_0 : i32, i32
  }
  func.func @transform_5(%arg0: i32) -> (i32, i32) {
    %c0_i32 = arith.constant 0 : i32
    %c0_i32_0 = arith.constant 0 : i32
    %c0_i32_1 = arith.constant 0 : i32
    return %c0_i32, %c0_i32_0 : i32, i32
  }
  func.func @transform_6(%arg0: i32) -> (i32, i32, i32) {
    %c0_i32 = arith.constant 0 : i32
    %c0_i32_0 = arith.constant 0 : i32
    %c0_i32_1 = arith.constant 0 : i32
    return %arg0, %c0_i32, %c0_i32_0 : i32, i32, i32
  }
}

</mosaic_0001>

<llo_original>
// kernel: tpu_custom_call.1
$region0: #{tpu_custom_call.1}
  #allocation0 [shape = 'u32[]', space=smem, size = 0x4, offset = 0x4, fixed_abs, tag = 'smem constant byte address 0x4 - core index']
  #allocation1 [shape = 'u32[144,128]{1,0:T(1,128)}', space=vmem, size = 0x12000, scoped, tag = 'internal scratch']
  %s0 = inlined_call_operand.hbm [shape: f32[2,16,256], index: 0, kind: input, shape index: {}]
  %s1 = inlined_call_operand.vmem [shape: f32[2,16], index: 1, kind: input, shape index: {}]
  %s2 = inlined_call_operand.vmem [shape: f32[16,2], index: 2, kind: input, shape index: {}]
  %s3 = inlined_call_operand.hbm [shape: f32[512,256], index: 3, kind: input, shape index: {}]
  %s4 = inlined_call_operand.vmem [shape: f32[16,1], index: 4, kind: input, shape index: {}]
  %s5 = inlined_call_operand.vmem [shape: f32[16,1], index: 5, kind: input, shape index: {}]
  %s6 = inlined_call_operand.hbm [shape: f32[2,16,256], index: 6, kind: output, shape index: {}]
  %s7 = sld [smem:[#allocation0]]
  $region65: #{tpu_custom_call.1} parent=0
    _
  %s9 = ssub.s32 1, %s7
  %s10 = scalar_select 0, %s9, %s7
  $region1: #{tpu_custom_call.1} parent=0
    #allocation2 [shape = 'u8[32768]{0}', space=vmem, size = 0x8000, scoped, tag = 'input window, operand 0']
    #allocation3 [shape = 's32[2]{0}', space=sflag, size = 0x8, scoped, tag = 'scoped memory for tpu_custom_call.1']
    #allocation4 [shape = 's32[2]{0}', space=sflag, size = 0x8, scoped, tag = 'scoped memory for tpu_custom_call.1']
    #allocation5 [shape = 'u8[524288]{0}', space=vmem, size = 0x80000, scoped, tag = 'input window, operand 3, single buffered']
    #allocation6 [shape = 's32[1]{0}', space=sflag, size = 0x4, scoped, tag = 'scoped memory for tpu_custom_call.1']
    #allocation7 [shape = 'u8[32768]{0}', space=vmem, size = 0x8000, scoped, tag = 'output window, operand 0']
    %11 = vsyncpa [#allocation3], 0
    %s12 = scalar_lea.sflag [#allocation3], 1
    %13 = vsyncpa %s12, 0
    %14 = vsyncpa [#allocation6], 0
    %15 = vsyncpa [#allocation4], 0
    %s16 = scalar_lea.sflag [#allocation4], 1
    %17 = vsyncpa %s16, 0
    loop: start=0, step=1, limit=4
    $region2: #{tpu_custom_call.1} parent=1 // loop_pre_header
      _
    $region3: #{tpu_custom_call.1} parent=1 // loop_header
      %s19 = sphi 0, %s23
      %p20 = scmp.ge.s32.totalorder %s19, 4
      %s29 = sphi 0, %s31
      %s32 = sphi 0, %s29
      %s33 = sphi 0, %s32
      %s49 = sphi 0, %s33
      %s53 = sphi 0, %s53
      %s55 = sphi 0, %s53
      %s56 = sphi 0, %s55
      %s70 = sphi 0, %s56
      %s74 = sphi 0, %s74
      %s76 = sphi 0, %s74
      %s77 = sphi 0, %s76
      %s91 = sphi 0, %s77
      %s95 = sphi 0, %s95
      %s97 = sphi 0, %s95
      %s98 = sphi 0, %s97
      %s112 = sphi 0, %s98
      %s116 = sphi 0, %s116
      %s118 = sphi 0, %s116
      %s119 = sphi 0, %s118
      %s133 = sphi 0, %s119
      %s137 = sphi 0, %s137
      %s139 = sphi 0, %s137
      %s140 = sphi 0, %s139
      %s154 = sphi 0, %s140
      %s160 = sphi 0, %s162
      %s163 = sphi 0, %s160
      %s164 = sphi 0, %s163
      %s180 = sphi 0, %s164
    $region4: #{tpu_custom_call.1} parent=1 // loop_header_branch
      %22 = sbr.rel (%p20) target = $region8
    $region5: #{tpu_custom_call.1} parent=1 // loop_body
      %s24 = ssub.s32 %s19, 1
      %s25 = ssub.s32 %s19, 2
      %s26 = sadd.s32 %s19, 1
      %s27 = ssub.s32 %s19, %s26
      %p28 = scmp.eq.s32.totalorder %s27, 0
      %s30 = sadd.s32 %s29, 1
      %s31 = scalar_select %p28, %s29, %s30
      %p34 = pneg %p28
      %p35 = scmp.eq.s32.totalorder %s19, 1
      %p36 = por %p34, %p35
      %p37 = scmp.ne.s32.totalorder %s29, %s32
      %p38 = scmp.eq.s32.totalorder %s19, 0
      %p39 = por %p37, %p38
      %p40 = scmp.ne.s32.totalorder %s29, %s32
      %p41 = scmp.eq.s32.totalorder %s24, 1
      %p42 = por %p40, %p41
      %p43 = scmp.ne.s32.totalorder %s32, %s33
      %p44 = scmp.eq.s32.totalorder %s24, 0
      %p45 = por %p43, %p44
      %p46 = scmp.ne.s32.totalorder %s32, %s33
      %p47 = scmp.eq.s32.totalorder %s25, 1
      %p48 = por %p46, %p47
      %p50 = scmp.ne.s32.totalorder %s33, %s49
      %p51 = scmp.eq.s32.totalorder %s25, 0
      %p52 = por %p50, %p51
      %s54 = sadd.s32 %s53, 1
      %p57 = scmp.eq.s32.totalorder %s19, 1
      %p58 = scmp.ne.s32.totalorder %s53, %s55
      %p59 = scmp.eq.s32.totalorder %s19, 0
      %p60 = por %p58, %p59
      %p61 = scmp.ne.s32.totalorder %s53, %s55
      %p62 = scmp.eq.s32.totalorder %s24, 1
      %p63 = por %p61, %p62
      %p64 = scmp.ne.s32.totalorder %s55, %s56
      %p65 = scmp.eq.s32.totalorder %s24, 0
      %p66 = por %p64, %p65
      %p67 = scmp.ne.s32.totalorder %s55, %s56
      %p68 = scmp.eq.s32.totalorder %s25, 1
      %p69 = por %p67, %p68
      %p71 = scmp.ne.s32.totalorder %s56, %s70
      %p72 = scmp.eq.s32.totalorder %s25, 0
      %p73 = por %p71, %p72
      %s75 = sadd.s32 %s74, 1
      %p78 = scmp.eq.s32.totalorder %s19, 1
      %p79 = scmp.ne.s32.totalorder %s74, %s76
      %p80 = scmp.eq.s32.totalorder %s19, 0
      %p81 = por %p79, %p80
      %p82 = scmp.ne.s32.totalorder %s74, %s76
      %p83 = scmp.eq.s32.totalorder %s24, 1
      %p84 = por %p82, %p83
      %p85 = scmp.ne.s32.totalorder %s76, %s77
      %p86 = scmp.eq.s32.totalorder %s24, 0
      %p87 = por %p85, %p86
      %p88 = scmp.ne.s32.totalorder %s76, %s77
      %p89 = scmp.eq.s32.totalorder %s25, 1
      %p90 = por %p88, %p89
      %p92 = scmp.ne.s32.totalorder %s77, %s91
      %p93 = scmp.eq.s32.totalorder %s25, 0
      %p94 = por %p92, %p93
      %s96 = sadd.s32 %s95, 1
      %p99 = scmp.eq.s32.totalorder %s19, 1
      %p100 = scmp.ne.s32.totalorder %s95, %s97
      %p101 = scmp.eq.s32.totalorder %s19, 0
      %p102 = por %p100, %p101
      %p103 = scmp.ne.s32.totalorder %s95, %s97
      %p104 = scmp.eq.s32.totalorder %s24, 1
      %p105 = por %p103, %p104
      %p106 = scmp.ne.s32.totalorder %s97, %s98
      %p107 = scmp.eq.s32.totalorder %s24, 0
      %p108 = por %p106, %p107
      %p109 = scmp.ne.s32.totalorder %s97, %s98
      %p110 = scmp.eq.s32.totalorder %s25, 1
      %p111 = por %p109, %p110
      %p113 = scmp.ne.s32.totalorder %s98, %s112
      %p114 = scmp.eq.s32.totalorder %s25, 0
      %p115 = por %p113, %p114
      %s117 = sadd.s32 %s116, 1
      %p120 = scmp.eq.s32.totalorder %s19, 1
      %p121 = scmp.ne.s32.totalorder %s116, %s118
      %p122 = scmp.eq.s32.totalorder %s19, 0
      %p123 = por %p121, %p122
      %p124 = scmp.ne.s32.totalorder %s116, %s118
      %p125 = scmp.eq.s32.totalorder %s24, 1
      %p126 = por %p124, %p125
      %p127 = scmp.ne.s32.totalorder %s118, %s119
      %p128 = scmp.eq.s32.totalorder %s24, 0
      %p129 = por %p127, %p128
      %p130 = scmp.ne.s32.totalorder %s118, %s119
      %p131 = scmp.eq.s32.totalorder %s25, 1
      %p132 = por %p130, %p131
      %p134 = scmp.ne.s32.totalorder %s119, %s133
      %p135 = scmp.eq.s32.totalorder %s25, 0
      %p136 = por %p134, %p135
      %s138 = sadd.s32 %s137, 1
      %p141 = scmp.eq.s32.totalorder %s19, 1
      %p142 = scmp.ne.s32.totalorder %s137, %s139
      %p143 = scmp.eq.s32.totalorder %s19, 0
      %p144 = por %p142, %p143
      %p145 = scmp.ne.s32.totalorder %s137, %s139
      %p146 = scmp.eq.s32.totalorder %s24, 1
      %p147 = por %p145, %p146
      %p148 = scmp.ne.s32.totalorder %s139, %s140
      %p149 = scmp.eq.s32.totalorder %s24, 0
      %p150 = por %p148, %p149
      %p151 = scmp.ne.s32.totalorder %s139, %s140
      %p152 = scmp.eq.s32.totalorder %s25, 1
      %p153 = por %p151, %p152
      %p155 = scmp.ne.s32.totalorder %s140, %s154
      %p156 = scmp.eq.s32.totalorder %s25, 0
      %p157 = por %p155, %p156
      %s158 = ssub.s32 %s19, %s26
      %p159 = scmp.eq.s32.totalorder %s158, 0
      %s161 = sadd.s32 %s160, 1
      %s162 = scalar_select %p159, %s160, %s161
      %p165 = pneg %p159
      %p166 = scmp.eq.s32.totalorder %s19, 1
      %p167 = por %p165, %p166
      %p168 = scmp.ne.s32.totalorder %s160, %s163
      %p169 = scmp.eq.s32.totalorder %s19, 0
      %p170 = por %p168, %p169
      %p171 = scmp.ne.s32.totalorder %s160, %s163
      %p172 = scmp.eq.s32.totalorder %s24, 1
      %p173 = por %p171, %p172
      %p174 = scmp.ne.s32.totalorder %s163, %s164
      %p175 = scmp.eq.s32.totalorder %s24, 0
      %p176 = por %p174, %p175
      %p177 = scmp.ne.s32.totalorder %s163, %s164
      %p178 = scmp.eq.s32.totalorder %s25, 1
      %p179 = por %p177, %p178
      %p181 = scmp.ne.s32.totalorder %s164, %s180
      %p182 = scmp.eq.s32.totalorder %s25, 0
      %p183 = por %p181, %p182
      %p184 = scmp.le.s32.totalorder 1, %s19
      %p185 = scmp.lt.s32.totalorder %s19, 3
      %p186 = pnand %p184, %p185
      %p187 = pneg %p186
      // Predicated region
      $region9: #{tpu_custom_call.1} parent=5 // pred_check
        _
      $region10: #{tpu_custom_call.1} parent=5 // pred_check_branch
        %189 = sbr.rel (%p186) target = $region12
      $region11: #{tpu_custom_call.1} parent=5 // pred_region
        %s190 = ssub.s32 %s19, 1
        // Predicated region
        $region13: #{tpu_custom_call.1} parent=11 // pred_check
          %p191 = pneg %p66
        $region14: #{tpu_custom_call.1} parent=11 // pred_check_branch
          %193 = sbr.rel (%p191) target = $region16
        $region15: #{tpu_custom_call.1} parent=11 // pred_region
          _
        $region16: #{tpu_custom_call.1} parent=11 // pred_fallthru
          _
        // Predicated region
        $region17: #{tpu_custom_call.1} parent=11 // pred_check
          %p194 = pneg %p87
        $region18: #{tpu_custom_call.1} parent=11 // pred_check_branch
          %196 = sbr.rel (%p194) target = $region20
        $region19: #{tpu_custom_call.1} parent=11 // pred_region
          _
        $region20: #{tpu_custom_call.1} parent=11 // pred_fallthru
          _
        // Predicated region
        $region21: #{tpu_custom_call.1} parent=11 // pred_check
          %p197 = pneg %p108
        $region22: #{tpu_custom_call.1} parent=11 // pred_check_branch
          %199 = sbr.rel (%p197) target = $region24
        $region23: #{tpu_custom_call.1} parent=11 // pred_region
          %s201 = ssub.s32 16384, 16384
          %202 = vsyncadd [#allocation6], %s201
          %s203 = sshll.u32 [#allocation5], 4
          %s204 = int_to_ptr.vmem [resolvable:$true] %s203
          %209 = dma.hbm_to_vmem [thread:$0]  %s3, 16384, %s204, [#allocation6], 256, 256, 16
        $region24: #{tpu_custom_call.1} parent=11 // pred_fallthru
          _
        // Predicated region
        $region25: #{tpu_custom_call.1} parent=11 // pred_check
          %p210 = pneg %p129
        $region26: #{tpu_custom_call.1} parent=11 // pred_check_branch
          %212 = sbr.rel (%p210) target = $region28
        $region27: #{tpu_custom_call.1} parent=11 // pred_region
          _
        $region28: #{tpu_custom_call.1} parent=11 // pred_fallthru
          _
        // Predicated region
        $region29: #{tpu_custom_call.1} parent=11 // pred_check
          %p213 = pneg %p150
        $region30: #{tpu_custom_call.1} parent=11 // pred_check_branch
          %215 = sbr.rel (%p213) target = $region32
        $region31: #{tpu_custom_call.1} parent=11 // pred_region
          _
        $region32: #{tpu_custom_call.1} parent=11 // pred_fallthru
          _
      $region12: #{tpu_custom_call.1} parent=5 // pred_fallthru
        _
      %p216 = scmp.lt.s32.totalorder %s19, 2
      // Predicated region
      $region33: #{tpu_custom_call.1} parent=5 // pred_check
        %p217 = pneg %p216
      $region34: #{tpu_custom_call.1} parent=5 // pred_check_branch
        %219 = sbr.rel (%p217) target = $region36
      $region35: #{tpu_custom_call.1} parent=5 // pred_region
        // Predicated region
        $region37: #{tpu_custom_call.1} parent=35 // pred_check
          %p220 = pneg %p39
        $region38: #{tpu_custom_call.1} parent=35 // pred_check_branch
          %222 = sbr.rel (%p220) target = $region40
        $region39: #{tpu_custom_call.1} parent=35 // pred_region
          %s223 = sand.u32 %s29, 1
          %s224 = scalar_lea.sflag [#allocation3], %s223
          %s225 = sand.u32 %s29, 1
          %s226 = smul.addr %s225, 32
          %s227 = scalar_lea.vmem [#allocation2], %s226
          %s229 = ssub.s32 512, 512
          %230 = vsyncadd %s224, %s229
          %s231 = smul.addr %s19, 4
          %s232 = smul.addr %s231, 128
          %s233 = scalar_lea.hbm %s0, %s232
          %s234 = sshll.u32 %s227, 4
          %s235 = int_to_ptr.vmem [resolvable:$true] %s234
          %240 = dma.hbm_to_vmem [thread:$0]  %s233, 512, %s235, %s224, 256, 256, 16
        $region40: #{tpu_custom_call.1} parent=35 // pred_fallthru
          _
      $region36: #{tpu_custom_call.1} parent=5 // pred_fallthru
        _
      %p241 = scmp.le.s32.totalorder 1, %s19
      %p242 = scmp.lt.s32.totalorder %s19, 3
      %p243 = pnand %p241, %p242
      %p244 = pneg %p243
      // Predicated region
      $region41: #{tpu_custom_call.1} parent=5 // pred_check
        _
      $region42: #{tpu_custom_call.1} parent=5 // pred_check_branch
        %246 = sbr.rel (%p243) target = $region44
      $region43: #{tpu_custom_call.1} parent=5 // pred_region
        %s247 = ssub.s32 %s19, 1
        %s248 = sand.u32 %s32, 1
        %s249 = scalar_lea.sflag [#allocation3], %s248
        %s250 = sand.u32 %s32, 1
        %s251 = smul.addr %s250, 32
        %s252 = scalar_lea.vmem [#allocation2], %s251
        // Predicated region
        $region45: #{tpu_custom_call.1} parent=43 // pred_check
          %p253 = pneg %p45
        $region46: #{tpu_custom_call.1} parent=43 // pred_check_branch
          %255 = sbr.rel (%p253) target = $region48
        $region47: #{tpu_custom_call.1} parent=43 // pred_region
          %256 = dma.done %s249, 512
        $region48: #{tpu_custom_call.1} parent=43 // pred_fallthru
          _
        // Predicated region
        $region49: #{tpu_custom_call.1} parent=43 // pred_check
          %p257 = pneg %p108
        $region50: #{tpu_custom_call.1} parent=43 // pred_check_branch
          %259 = sbr.rel (%p257) target = $region52
        $region51: #{tpu_custom_call.1} parent=43 // pred_region
          %260 = dma.done [#allocation6], 16384
        $region52: #{tpu_custom_call.1} parent=43 // pred_fallthru
          _
        %s261 = sand.u32 %s32, 1
        %s262 = scalar_lea.sflag [#allocation3], %s261
        %s263 = sand.u32 %s32, 1
        %s264 = smul.addr %s263, 32
        %s265 = scalar_lea.vmem [#allocation2], %s264
        %p266 = pneg %p45
        %p267 = pneg %p42
        %p268 = pneg %p66
        %p269 = pneg %p63
        %p270 = pneg %p87
        %p271 = pneg %p84
        %p272 = pneg %p108
        %p273 = pneg %p105
        %p274 = pneg %p129
        %p275 = pneg %p126
        %p276 = pneg %p150
        %p277 = pneg %p147
        %p278 = pneg %p176
        %p279 = pneg %p173
        %s280 = sand.u32 %s163, 1
        %s281 = scalar_lea.sflag [#allocation4], %s280
        %s282 = sand.u32 %s163, 1
        %s283 = smul.addr %s282, 32
        %s284 = scalar_lea.vmem [#allocation7], %s283
        %v285 = vld [vmem:[%s252] sm:$0xff]
        %v286 = vld [vmem:[%s252 + $0x8] sm:$0xff]
        %v287 = vld [vmem:[%s252 + $0x10] sm:$0xff]
        %v288 = vld [vmem:[%s252 + $0x18] sm:$0xff]
        %v289 = vadd.f32 %v285, %v286
        %290 = vadd.xlane.f32.xlu0 %v289
        %v291 = vpop.xlane.xlu0 %290
        %v292 = vadd.f32 %v287, %v288
        %293 = vadd.xlane.f32.xlu0 %v292
        %v294 = vpop.xlane.xlu0 %293
        %v295 = vrcp.pop 256.0
        %v296 = vmul.f32 %v291, %v295
        %v297 = vmul.f32 %v294, %v295
        %v298 = vmax.f32 %v285, %v286
        %299 = vmax.xlane.f32.xlu0 %v298
        %v300 = vpop.xlane.xlu0 %299
        %v301 = vmax.f32 %v287, %v288
        %302 = vmax.xlane.f32.xlu0 %v301
        %v303 = vpop.xlane.xlu0 %302
        %vm304 = vcmask 7168
        %v305 = vsel %vm304, %v296, %v300
        %v306 = vsel %vm304, %v297, %v303
        %v307 = vld [vmem:[%s1] sm:$0x3]
        %vm308 = vcmask 130048
        %v310 = vsel %vm308, %v307, 0
        %312 = vmatprep.subr.mxu0 0.0
        %313 = vmatpush1.msra.mxu0 %v305
        %314 = vmatprep.subr.mxu0 0.0
        %315 = vmatpush1.msra.mxu0 %v306
        %316 = vmatprep.subr.mxu0 0.0
        %317 = vmatpush1.msra.mxu0 0.0
        %318 = vmatprep.subr.mxu0 0.0
        %319 = vmatpush1.msra.mxu0 0.0
        %320 = vmatprep.subr.mxu0 0.0
        %321 = vmatpush1.msra.mxu0 0.0
        %322 = vmatprep.subr.mxu0 0.0
        %323 = vmatpush1.msra.mxu0 0.0
        %324 = vmatprep.subr.mxu0 0.0
        %325 = vmatpush1.msra.mxu0 0.0
        %326 = vmatprep.subr.mxu0 0.0
        %327 = vmatpush1.msra.mxu0 0.0
        %328 = vmatprep.subr.mxu0 0.0
        %329 = vmatpush1.msra.mxu0 0.0
        %330 = vmatprep.subr.mxu0 0.0
        %331 = vmatpush1.msra.mxu0 0.0
        %332 = vmatprep.subr.mxu0 0.0
        %333 = vmatpush1.msra.mxu0 0.0
        %334 = vmatprep.subr.mxu0 0.0
        %335 = vmatpush1.msra.mxu0 0.0
        %336 = vmatprep.subr.mxu0 0.0
        %337 = vmatpush1.msra.mxu0 0.0
        %338 = vmatprep.subr.mxu0 0.0
        %339 = vmatpush1.msra.mxu0 0.0
        %340 = vmatprep.subr.mxu0 0.0
        %341 = vmatpush1.msra.mxu0 0.0
        %342 = vmatprep.subr.mxu0 0.0
        %343 = vmatpush1.msra.mxu0 0.0
        %344 = vmatprep.subr.mxu0 0.0
        %345 = vmatpush1.msra.mxu0 0.0
        %346 = vmatprep.subr.mxu0 0.0
        %347 = vmatpush1.msra.mxu0 0.0
        %348 = vmatprep.subr.mxu0 0.0
        %349 = vmatpush1.msra.mxu0 0.0
        %350 = vmatprep.subr.mxu0 0.0
        %351 = vmatpush1.msra.mxu0 0.0
        %352 = vmatprep.subr.mxu0 0.0
        %353 = vmatpush1.msra.mxu0 0.0
        %354 = vmatprep.subr.mxu0 0.0
        %355 = vmatpush1.msra.mxu0 0.0
        %356 = vmatprep.subr.mxu0 0.0
        %357 = vmatpush1.msra.mxu0 0.0
        %358 = vmatprep.subr.mxu0 0.0
        %359 = vmatpush1.msra.mxu0 0.0
        %360 = vmatprep.subr.mxu0 0.0
        %361 = vmatpush1.msra.mxu0 0.0
        %362 = vmatprep.subr.mxu0 0.0
        %363 = vmatpush1.msra.mxu0 0.0
        %364 = vmatprep.subr.mxu0 0.0
        %365 = vmatpush1.msra.mxu0 0.0
        %366 = vmatprep.subr.mxu0 0.0
        %367 = vmatpush1.msra.mxu0 0.0
        %368 = vmatprep.subr.mxu0 0.0
        %369 = vmatpush1.msra.mxu0 0.0
        %370 = vmatprep.subr.mxu0 0.0
        %371 = vmatpush1.msra.mxu0 0.0
        %372 = vmatprep.subr.mxu0 0.0
        %373 = vmatpush1.msra.mxu0 0.0
        %374 = vmatprep.subr.mxu0 0.0
        %375 = vmatpush1.msra.mxu0 0.0
        %376 = vmatprep.mubr.f32.mxu0 0.0
        %377 = vmatmul.mubr.f32.gmra.mrb[0].mxu0 %v310
        %v378 = vpop.f32.mrb[0].mxu0
        %v379 = vadd.f32 0.0, %v378
        %v380 = vpop.f32.mrb[0].mxu0
        %381 = vdwg.mxu0
        %v382 = vmax.f32 %v379, 0.0
        %v383 = vld [vmem:[%s2] sm:$0xff]
        %v384 = vld [vmem:[%s2 + $0x8] sm:$0xff]
        %vm385 = vcmask 15360
        %v387 = vsel %vm385, %v383, 0
        %v390 = vsel %vm385, %v384, 0
        %vm392 = vcmask 1041408
        %v394 = vsel %vm392, %v382, 0
        %396 = vmatprep.subr.mxu0 0.0
        %397 = vmatpush1.msra.mxu0 %v394
        %398 = vmatprep.subr.mxu0 0.0
        %399 = vmatpush1.msra.mxu0 0.0
        %400 = vmatprep.subr.mxu0 0.0
        %401 = vmatpush1.msra.mxu0 0.0
        %402 = vmatprep.subr.mxu0 0.0
        %403 = vmatpush1.msra.mxu0 0.0
        %404 = vmatprep.subr.mxu0 0.0
        %405 = vmatpush1.msra.mxu0 0.0
        %406 = vmatprep.subr.mxu0 0.0
        %407 = vmatpush1.msra.mxu0 0.0
        %408 = vmatprep.subr.mxu0 0.0
        %409 = vmatpush1.msra.mxu0 0.0
        %410 = vmatprep.subr.mxu0 0.0
        %411 = vmatpush1.msra.mxu0 0.0
        %412 = vmatprep.subr.mxu0 0.0
        %413 = vmatpush1.msra.mxu0 0.0
        %414 = vmatprep.subr.mxu0 0.0
        %415 = vmatpush1.msra.mxu0 0.0
        %416 = vmatprep.subr.mxu0 0.0
        %417 = vmatpush1.msra.mxu0 0.0
        %418 = vmatprep.subr.mxu0 0.0
        %419 = vmatpush1.msra.mxu0 0.0
        %420 = vmatprep.subr.mxu0 0.0
        %421 = vmatpush1.msra.mxu0 0.0
        %422 = vmatprep.subr.mxu0 0.0
        %423 = vmatpush1.msra.mxu0 0.0
        %424 = vmatprep.subr.mxu0 0.0
        %425 = vmatpush1.msra.mxu0 0.0
        %426 = vmatprep.subr.mxu0 0.0
        %427 = vmatpush1.msra.mxu0 0.0
        %428 = vmatprep.subr.mxu0 0.0
        %429 = vmatpush1.msra.mxu0 0.0
        %430 = vmatprep.subr.mxu0 0.0
        %431 = vmatpush1.msra.mxu0 0.0
        %432 = vmatprep.subr.mxu0 0.0
        %433 = vmatpush1.msra.mxu0 0.0
        %434 = vmatprep.subr.mxu0 0.0
        %435 = vmatpush1.msra.mxu0 0.0
        %436 = vmatprep.subr.mxu0 0.0
        %437 = vmatpush1.msra.mxu0 0.0
        %438 = vmatprep.subr.mxu0 0.0
        %439 = vmatpush1.msra.mxu0 0.0
        %440 = vmatprep.subr.mxu0 0.0
        %441 = vmatpush1.msra.mxu0 0.0
        %442 = vmatprep.subr.mxu0 0.0
        %443 = vmatpush1.msra.mxu0 0.0
        %444 = vmatprep.subr.mxu0 0.0
        %445 = vmatpush1.msra.mxu0 0.0
        %446 = vmatprep.subr.mxu0 0.0
        %447 = vmatpush1.msra.mxu0 0.0
        %448 = vmatprep.subr.mxu0 0.0
        %449 = vmatpush1.msra.mxu0 0.0
        %450 = vmatprep.subr.mxu0 0.0
        %451 = vmatpush1.msra.mxu0 0.0
        %452 = vmatprep.subr.mxu0 0.0
        %453 = vmatpush1.msra.mxu0 0.0
        %454 = vmatprep.subr.mxu0 0.0
        %455 = vmatpush1.msra.mxu0 0.0
        %456 = vmatprep.subr.mxu0 0.0
        %457 = vmatpush1.msra.mxu0 0.0
        %458 = vmatprep.subr.mxu0 0.0
        %459 = vmatpush1.msra.mxu0 0.0
        %460 = vmatprep.mubr.f32.mxu0 0.0
        %461 = vmatmul.mubr.f32.gmra.mrb[0].mxu0 %v387
        %v462 = vpop.f32.mrb[0].mxu0
        %v463 = vadd.f32 0.0, %v462
        %v464 = vpop.f32.mrb[0].mxu0
        %465 = vmatprep.mubr.f32.mxu0 0.0
        %466 = vmatmul.mubr.f32.gmra.mrb[0].mxu0 %v390
        %v467 = vpop.f32.mrb[0].mxu0
        %v468 = vadd.f32 0.0, %v467
        %v469 = vpop.f32.mrb[0].mxu0
        %470 = vdwg.mxu0
        %v471 = vld [vmem:[#allocation5] sm:$0xff]
        %v472 = vld [vmem:[#allocation5 + $0x8] sm:$0xff]
        %v473 = vld [vmem:[#allocation5 + $0x10] sm:$0xff]
        %v474 = vld [vmem:[#allocation5 + $0x18] sm:$0xff]
        %v475 = vld [vmem:[#allocation5 + $0x20] sm:$0xff]
        %v476 = vld [vmem:[#allocation5 + $0x28] sm:$0xff]
        %v477 = vld [vmem:[#allocation5 + $0x30] sm:$0xff]
        %v478 = vld [vmem:[#allocation5 + $0x38] sm:$0xff]
        %v479 = vld [vmem:[#allocation5 + $0x40] sm:$0xff]
        %v480 = vld [vmem:[#allocation5 + $0x48] sm:$0xff]
        %v481 = vld [vmem:[#allocation5 + $0x50] sm:$0xff]
        %v482 = vld [vmem:[#allocation5 + $0x58] sm:$0xff]
        %v483 = vld [vmem:[#allocation5 + $0x60] sm:$0xff]
        %v484 = vld [vmem:[#allocation5 + $0x68] sm:$0xff]
        %v485 = vld [vmem:[#allocation5 + $0x70] sm:$0xff]
        %v486 = vld [vmem:[#allocation5 + $0x78] sm:$0xff]
        %v487 = vld [vmem:[#allocation5 + $0x80] sm:$0xff]
        %v488 = vld [vmem:[#allocation5 + $0x88] sm:$0xff]
        %v489 = vld [vmem:[#allocation5 + $0x90] sm:$0xff]
        %v490 = vld [vmem:[#allocation5 + $0x98] sm:$0xff]
        %v491 = vld [vmem:[#allocation5 + $0xa0] sm:$0xff]
        %v492 = vld [vmem:[#allocation5 + $0xa8] sm:$0xff]
        %v493 = vld [vmem:[#allocation5 + $0xb0] sm:$0xff]
        %v494 = vld [vmem:[#allocation5 + $0xb8] sm:$0xff]
        %v495 = vld [vmem:[#allocation5 + $0xc0] sm:$0xff]
        %v496 = vld [vmem:[#allocation5 + $0xc8] sm:$0xff]
        %v497 = vld [vmem:[#allocation5 + $0xd0] sm:$0xff]
        %v498 = vld [vmem:[#allocation5 + $0xd8] sm:$0xff]
        %v499 = vld [vmem:[#allocation5 + $0xe0] sm:$0xff]
        %v500 = vld [vmem:[#allocation5 + $0xe8] sm:$0xff]
        %v501 = vld [vmem:[#allocation5 + $0xf0] sm:$0xff]
        %v502 = vld [vmem:[#allocation5 + $0xf8] sm:$0xff]
        %v503 = vld [vmem:[#allocation5 + $0x100] sm:$0xff]
        %v504 = vld [vmem:[#allocation5 + $0x108] sm:$0xff]
        %v505 = vld [vmem:[#allocation5 + $0x110] sm:$0xff]
        %v506 = vld [vmem:[#allocation5 + $0x118] sm:$0xff]
        %v507 = vld [vmem:[#allocation5 + $0x120] sm:$0xff]
        %v508 = vld [vmem:[#allocation5 + $0x128] sm:$0xff]
        %v509 = vld [vmem:[#allocation5 + $0x130] sm:$0xff]
        %v510 = vld [vmem:[#allocation5 + $0x138] sm:$0xff]
        %v511 = vld [vmem:[#allocation5 + $0x140] sm:$0xff]
        %v512 = vld [vmem:[#allocation5 + $0x148] sm:$0xff]
        %v513 = vld [vmem:[#allocation5 + $0x150] sm:$0xff]
        %v514 = vld [vmem:[#allocation5 + $0x158] sm:$0xff]
        %v515 = vld [vmem:[#allocation5 + $0x160] sm:$0xff]
        %v516 = vld [vmem:[#allocation5 + $0x168] sm:$0xff]
        %v517 = vld [vmem:[#allocation5 + $0x170] sm:$0xff]
        %v518 = vld [vmem:[#allocation5 + $0x178] sm:$0xff]
        %v519 = vld [vmem:[#allocation5 + $0x180] sm:$0xff]
        %v520 = vld [vmem:[#allocation5 + $0x188] sm:$0xff]
        %v521 = vld [vmem:[#allocation5 + $0x190] sm:$0xff]
        %v522 = vld [vmem:[#allocation5 + $0x198] sm:$0xff]
        %v523 = vld [vmem:[#allocation5 + $0x1a0] sm:$0xff]
        %v524 = vld [vmem:[#allocation5 + $0x1a8] sm:$0xff]
        %v525 = vld [vmem:[#allocation5 + $0x1b0] sm:$0xff]
        %v526 = vld [vmem:[#allocation5 + $0x1b8] sm:$0xff]
        %v527 = vld [vmem:[#allocation5 + $0x1c0] sm:$0xff]
        %v528 = vld [vmem:[#allocation5 + $0x1c8] sm:$0xff]
        %v529 = vld [vmem:[#allocation5 + $0x1d0] sm:$0xff]
        %v530 = vld [vmem:[#allocation5 + $0x1d8] sm:$0xff]
        %v531 = vld [vmem:[#allocation5 + $0x1e0] sm:$0xff]
        %v532 = vld [vmem:[#allocation5 + $0x1e8] sm:$0xff]
        %v533 = vld [vmem:[#allocation5 + $0x1f0] sm:$0xff]
        %v534 = vld [vmem:[#allocation5 + $0x1f8] sm:$0xff]
        %v535 = vld [vmem:[#allocation5 + $0x200] sm:$0xff]
        %v536 = vld [vmem:[#allocation5 + $0x208] sm:$0xff]
        %v537 = vld [vmem:[#allocation5 + $0x210] sm:$0xff]
        %v538 = vld [vmem:[#allocation5 + $0x218] sm:$0xff]
        %v539 = vld [vmem:[#allocation5 + $0x220] sm:$0xff]
        %v540 = vld [vmem:[#allocation5 + $0x228] sm:$0xff]
        %v541 = vld [vmem:[#allocation5 + $0x230] sm:$0xff]
        %v542 = vld [vmem:[#allocation5 + $0x238] sm:$0xff]
        %v543 = vld [vmem:[#allocation5 + $0x240] sm:$0xff]
        %v544 = vld [vmem:[#allocation5 + $0x248] sm:$0xff]
        %v545 = vld [vmem:[#allocation5 + $0x250] sm:$0xff]
        %v546 = vld [vmem:[#allocation5 + $0x258] sm:$0xff]
        %v547 = vld [vmem:[#allocation5 + $0x260] sm:$0xff]
        %v548 = vld [vmem:[#allocation5 + $0x268] sm:$0xff]
        %v549 = vld [vmem:[#allocation5 + $0x270] sm:$0xff]
        %v550 = vld [vmem:[#allocation5 + $0x278] sm:$0xff]
        %v551 = vld [vmem:[#allocation5 + $0x280] sm:$0xff]
        %v552 = vld [vmem:[#allocation5 + $0x288] sm:$0xff]
        %v553 = vld [vmem:[#allocation5 + $0x290] sm:$0xff]
        %v554 = vld [vmem:[#allocation5 + $0x298] sm:$0xff]
        %v555 = vld [vmem:[#allocation5 + $0x2a0] sm:$0xff]
        %v556 = vld [vmem:[#allocation5 + $0x2a8] sm:$0xff]
        %v557 = vld [vmem:[#allocation5 + $0x2b0] sm:$0xff]
        %v558 = vld [vmem:[#allocation5 + $0x2b8] sm:$0xff]
        %v559 = vld [vmem:[#allocation5 + $0x2c0] sm:$0xff]
        %v560 = vld [vmem:[#allocation5 + $0x2c8] sm:$0xff]
        %v561 = vld [vmem:[#allocation5 + $0x2d0] sm:$0xff]
        %v562 = vld [vmem:[#allocation5 + $0x2d8] sm:$0xff]
        %v563 = vld [vmem:[#allocation5 + $0x2e0] sm:$0xff]
        %v564 = vld [vmem:[#allocation5 + $0x2e8] sm:$0xff]
        %v565 = vld [vmem:[#allocation5 + $0x2f0] sm:$0xff]
        %v566 = vld [vmem:[#allocation5 + $0x2f8] sm:$0xff]
        %v567 = vld [vmem:[#allocation5 + $0x300] sm:$0xff]
        %v568 = vld [vmem:[#allocation5 + $0x308] sm:$0xff]
        %v569 = vld [vmem:[#allocation5 + $0x310] sm:$0xff]
        %v570 = vld [vmem:[#allocation5 + $0x318] sm:$0xff]
        %v571 = vld [vmem:[#allocation5 + $0x320] sm:$0xff]
        %v572 = vld [vmem:[#allocation5 + $0x328] sm:$0xff]
        %v573 = vld [vmem:[#allocation5 + $0x330] sm:$0xff]
        %v574 = vld [vmem:[#allocation5 + $0x338] sm:$0xff]
        %v575 = vld [vmem:[#allocation5 + $0x340] sm:$0xff]
        %v576 = vld [vmem:[#allocation5 + $0x348] sm:$0xff]
        %v577 = vld [vmem:[#allocation5 + $0x350] sm:$0xff]
        %v578 = vld [vmem:[#allocation5 + $0x358] sm:$0xff]
        %v579 = vld [vmem:[#allocation5 + $0x360] sm:$0xff]
        %v580 = vld [vmem:[#allocation5 + $0x368] sm:$0xff]
        %v581 = vld [vmem:[#allocation5 + $0x370] sm:$0xff]
        %v582 = vld [vmem:[#allocation5 + $0x378] sm:$0xff]
        %v583 = vld [vmem:[#allocation5 + $0x380] sm:$0xff]
        %v584 = vld [vmem:[#allocation5 + $0x388] sm:$0xff]
        %v585 = vld [vmem:[#allocation5 + $0x390] sm:$0xff]
        %v586 = vld [vmem:[#allocation5 + $0x398] sm:$0xff]
        %v587 = vld [vmem:[#allocation5 + $0x3a0] sm:$0xff]
        %v588 = vld [vmem:[#allocation5 + $0x3a8] sm:$0xff]
        %v589 = vld [vmem:[#allocation5 + $0x3b0] sm:$0xff]
        %v590 = vld [vmem:[#allocation5 + $0x3b8] sm:$0xff]
        %v591 = vld [vmem:[#allocation5 + $0x3c0] sm:$0xff]
        %v592 = vld [vmem:[#allocation5 + $0x3c8] sm:$0xff]
        %v593 = vld [vmem:[#allocation5 + $0x3d0] sm:$0xff]
        %v594 = vld [vmem:[#allocation5 + $0x3d8] sm:$0xff]
        %v595 = vld [vmem:[#allocation5 + $0x3e0] sm:$0xff]
        %v596 = vld [vmem:[#allocation5 + $0x3e8] sm:$0xff]
        %v597 = vld [vmem:[#allocation5 + $0x3f0] sm:$0xff]
        %v598 = vld [vmem:[#allocation5 + $0x3f8] sm:$0xff]
        %v599 = vld [vmem:[%s4] sm:$0xff]
        %v600 = vld [vmem:[%s4 + $0x8] sm:$0xff]
        %v601 = vld [vmem:[%s5] sm:$0xff]
        %v602 = vld [vmem:[%s5 + $0x8] sm:$0xff]
        %605 = vrot.lane.b32.xlu0 %v463, 127
        %v606 = vpop.permute.xlu0 %605
        %607 = vrot.lane.b32.xlu0 %v468, 127
        %v608 = vpop.permute.xlu0 %607
        %v611 = vadd.f32 %v463, %v606
        %v612 = vadd.f32 %v468, %v608
        %v613 = vxor.u32 %v611, 2147483648
        %v614 = vxor.u32 %v612, 2147483648
        %v615 = vmul.f32 %v613, 1.442695
        %v616 = vpow.pop %v615
        %v617 = vmul.f32 %v614, 1.442695
        %v618 = vpow.pop %v617
        %v619 = vadd.f32 %v616, 1.0
        %v620 = vadd.f32 %v618, 1.0
        %v621 = vrcp.pop %v619
        %v622 = vmul.f32 1.0, %v621
        %v623 = vrcp.pop %v620
        %v624 = vmul.f32 1.0, %v623
        %626 = vset.pattern.permute.xlu0 0
        %627 = vperm.xlu0 %626, %v622
        %v628 = vpop.permute.xlu0 %627
        %631 = vset.pattern.permute.xlu0 0
        %632 = vperm.xlu0 %631, %v624
        %v633 = vpop.permute.xlu0 %632
        %v635 = vmul.f32 %v285, %v628
        %v636 = vmul.f32 %v286, %v628
        %v637 = vmul.f32 %v287, %v633
        %v638 = vmul.f32 %v288, %v633
        %v639 = vadd.f32 %v635, %v637
        %v640 = vrot.slane %v639, 4
        %v641 = vadd.f32 %v639, %v640
        %v642 = vrot.slane %v641, 2
        %v643 = vadd.f32 %v641, %v642
        %v644 = vrot.slane %v643, 1
        %v645 = vadd.f32 %v643, %v644
        %v646 = vadd.f32 %v636, %v638
        %v647 = vrot.slane %v646, 4
        %v648 = vadd.f32 %v646, %v647
        %v649 = vrot.slane %v648, 2
        %v650 = vadd.f32 %v648, %v649
        %v651 = vrot.slane %v650, 1
        %v652 = vadd.f32 %v650, %v651
        %v653 = vrcp.pop 16.0
        %v654 = vmul.f32 %v645, %v653
        %v655 = vmul.f32 %v652, %v653
        %v656 = vmax.f32 %v635, %v637
        %v657 = vrot.slane %v656, 4
        %v658 = vmax.f32 %v656, %v657
        %v659 = vrot.slane %v658, 2
        %v660 = vmax.f32 %v658, %v659
        %v661 = vrot.slane %v660, 1
        %v662 = vmax.f32 %v660, %v661
        %v663 = vmax.f32 %v636, %v638
        %v664 = vrot.slane %v663, 4
        %v665 = vmax.f32 %v663, %v664
        %v666 = vrot.slane %v665, 2
        %v667 = vmax.f32 %v665, %v666
        %v668 = vrot.slane %v667, 1
        %v669 = vmax.f32 %v667, %v668
        %670 = vmatprep.subr.mxu0 %v472
        %671 = vmatpush1.msra.mxu0 %v471
        %672 = vmatprep.subr.mxu0 %v474
        %673 = vmatpush1.msra.mxu0 %v473
        %674 = vmatprep.subr.mxu0 %v476
        %675 = vmatpush1.msra.mxu0 %v475
        %676 = vmatprep.subr.mxu0 %v478
        %677 = vmatpush1.msra.mxu0 %v477
        %678 = vmatprep.subr.mxu0 %v480
        %679 = vmatpush1.msra.mxu0 %v479
        %680 = vmatprep.subr.mxu0 %v482
        %681 = vmatpush1.msra.mxu0 %v481
        %682 = vmatprep.subr.mxu0 %v484
        %683 = vmatpush1.msra.mxu0 %v483
        %684 = vmatprep.subr.mxu0 %v486
        %685 = vmatpush1.msra.mxu0 %v485
        %686 = vmatprep.subr.mxu0 %v488
        %687 = vmatpush1.msra.mxu0 %v487
        %688 = vmatprep.subr.mxu0 %v490
        %689 = vmatpush1.msra.mxu0 %v489
        %690 = vmatprep.subr.mxu0 %v492
        %691 = vmatpush1.msra.mxu0 %v491
        %692 = vmatprep.subr.mxu0 %v494
        %693 = vmatpush1.msra.mxu0 %v493
        %694 = vmatprep.subr.mxu0 %v496
        %695 = vmatpush1.msra.mxu0 %v495
        %696 = vmatprep.subr.mxu0 %v498
        %697 = vmatpush1.msra.mxu0 %v497
        %698 = vmatprep.subr.mxu0 %v500
        %699 = vmatpush1.msra.mxu0 %v499
        %700 = vmatprep.subr.mxu0 %v502
        %701 = vmatpush1.msra.mxu0 %v501
        %702 = vmatprep.subr.mxu0 %v504
        %703 = vmatpush1.msra.mxu0 %v503
        %704 = vmatprep.subr.mxu0 %v506
        %705 = vmatpush1.msra.mxu0 %v505
        %706 = vmatprep.subr.mxu0 %v508
        %707 = vmatpush1.msra.mxu0 %v507
        %708 = vmatprep.subr.mxu0 %v510
        %709 = vmatpush1.msra.mxu0 %v509
        %710 = vmatprep.subr.mxu0 %v512
        %711 = vmatpush1.msra.mxu0 %v511
        %712 = vmatprep.subr.mxu0 %v514
        %713 = vmatpush1.msra.mxu0 %v513
        %714 = vmatprep.subr.mxu0 %v516
        %715 = vmatpush1.msra.mxu0 %v515
        %716 = vmatprep.subr.mxu0 %v518
        %717 = vmatpush1.msra.mxu0 %v517
        %718 = vmatprep.subr.mxu0 %v520
        %719 = vmatpush1.msra.mxu0 %v519
        %720 = vmatprep.subr.mxu0 %v522
        %721 = vmatpush1.msra.mxu0 %v521
        %722 = vmatprep.subr.mxu0 %v524
        %723 = vmatpush1.msra.mxu0 %v523
        %724 = vmatprep.subr.mxu0 %v526
        %725 = vmatpush1.msra.mxu0 %v525
        %726 = vmatprep.subr.mxu0 %v528
        %727 = vmatpush1.msra.mxu0 %v527
        %728 = vmatprep.subr.mxu0 %v530
        %729 = vmatpush1.msra.mxu0 %v529
        %730 = vmatprep.subr.mxu0 %v532
        %731 = vmatpush1.msra.mxu0 %v531
        %732 = vmatprep.subr.mxu0 %v534
        %733 = vmatpush1.msra.mxu0 %v533
        %734 = vmatprep.mubr.f32.mxu0 %v655
        %735 = vmatmul.mubr.f32.gmra.mrb[0].mxu0 %v654
        %v736 = vpop.f32.mrb[0].mxu0
        %v737 = vadd.f32 0.0, %v736
        %v738 = vpop.f32.mrb[0].mxu0
        %v739 = vadd.f32 0.0, %v738
        %740 = vdwg.mxu0
        %741 = vmatprep.subr.mxu0 %v536
        %742 = vmatpush1.msra.mxu0 %v535
        %743 = vmatprep.subr.mxu0 %v538
        %744 = vmatpush1.msra.mxu0 %v537
        %745 = vmatprep.subr.mxu0 %v540
        %746 = vmatpush1.msra.mxu0 %v539
        %747 = vmatprep.subr.mxu0 %v542
        %748 = vmatpush1.msra.mxu0 %v541
        %749 = vmatprep.subr.mxu0 %v544
        %750 = vmatpush1.msra.mxu0 %v543
        %751 = vmatprep.subr.mxu0 %v546
        %752 = vmatpush1.msra.mxu0 %v545
        %753 = vmatprep.subr.mxu0 %v548
        %754 = vmatpush1.msra.mxu0 %v547
        %755 = vmatprep.subr.mxu0 %v550
        %756 = vmatpush1.msra.mxu0 %v549
        %757 = vmatprep.subr.mxu0 %v552
        %758 = vmatpush1.msra.mxu0 %v551
        %759 = vmatprep.subr.mxu0 %v554
        %760 = vmatpush1.msra.mxu0 %v553
        %761 = vmatprep.subr.mxu0 %v556
        %762 = vmatpush1.msra.mxu0 %v555
        %763 = vmatprep.subr.mxu0 %v558
        %764 = vmatpush1.msra.mxu0 %v557
        %765 = vmatprep.subr.mxu0 %v560
        %766 = vmatpush1.msra.mxu0 %v559
        %767 = vmatprep.subr.mxu0 %v562
        %768 = vmatpush1.msra.mxu0 %v561
        %769 = vmatprep.subr.mxu0 %v564
        %770 = vmatpush1.msra.mxu0 %v563
        %771 = vmatprep.subr.mxu0 %v566
        %772 = vmatpush1.msra.mxu0 %v565
        %773 = vmatprep.subr.mxu0 %v568
        %774 = vmatpush1.msra.mxu0 %v567
        %775 = vmatprep.subr.mxu0 %v570
        %776 = vmatpush1.msra.mxu0 %v569
        %777 = vmatprep.subr.mxu0 %v572
        %778 = vmatpush1.msra.mxu0 %v571
        %779 = vmatprep.subr.mxu0 %v574
        %780 = vmatpush1.msra.mxu0 %v573
        %781 = vmatprep.subr.mxu0 %v576
        %782 = vmatpush1.msra.mxu0 %v575
        %783 = vmatprep.subr.mxu0 %v578
        %784 = vmatpush1.msra.mxu0 %v577
        %785 = vmatprep.subr.mxu0 %v580
        %786 = vmatpush1.msra.mxu0 %v579
        %787 = vmatprep.subr.mxu0 %v582
        %788 = vmatpush1.msra.mxu0 %v581
        %789 = vmatprep.subr.mxu0 %v584
        %790 = vmatpush1.msra.mxu0 %v583
        %791 = vmatprep.subr.mxu0 %v586
        %792 = vmatpush1.msra.mxu0 %v585
        %793 = vmatprep.subr.mxu0 %v588
        %794 = vmatpush1.msra.mxu0 %v587
        %795 = vmatprep.subr.mxu0 %v590
        %796 = vmatpush1.msra.mxu0 %v589
        %797 = vmatprep.subr.mxu0 %v592
        %798 = vmatpush1.msra.mxu0 %v591
        %799 = vmatprep.subr.mxu0 %v594
        %800 = vmatpush1.msra.mxu0 %v593
        %801 = vmatprep.subr.mxu0 %v596
        %802 = vmatpush1.msra.mxu0 %v595
        %803 = vmatprep.subr.mxu0 %v598
        %804 = vmatpush1.msra.mxu0 %v597
        %805 = vmatprep.mubr.f32.mxu0 %v669
        %806 = vmatmul.mubr.f32.gmra.mrb[0].mxu0 %v662
        %v807 = vpop.f32.mrb[0].mxu0
        %v808 = vadd.f32 %v737, %v807
        %v809 = vpop.f32.mrb[0].mxu0
        %v810 = vadd.f32 %v739, %v809
        %811 = vdwg.mxu0
        %v812 = vxor.u32 %v808, 2147483648
        %v813 = vxor.u32 %v810, 2147483648
        %v814 = vmul.f32 %v812, 1.442695
        %v815 = vpow.pop %v814
        %v816 = vmul.f32 %v813, 1.442695
        %v817 = vpow.pop %v816
        %v818 = vadd.f32 %v815, 1.0
        %v819 = vadd.f32 %v817, 1.0
        %v820 = vrcp.pop %v818
        %v821 = vmul.f32 1.0, %v820
        %v822 = vrcp.pop %v819
        %v823 = vmul.f32 1.0, %v822
        %v824 = vlaneseq
        %v825 = vshrl.u32 %v824, 7
        %v826 = vsub.s32 0, %v825
        %v827 = vrot.slane %v821, %v826
        %v828 = vlaneseq
        %v829 = vshrl.u32 %v828, 7
        %v830 = vsub.s32 0, %v829
        %v831 = vrot.slane %v823, %v830
        %v832 = vmul.f32 %v635, %v827
        %v833 = vmul.f32 %v636, %v831
        %v834 = vmul.f32 %v637, %v827
        %v835 = vmul.f32 %v638, %v831
        %837 = vset.pattern.permute.xlu0 0
        %838 = vperm.xlu0 %837, %v599
        %v839 = vpop.permute.xlu0 %838
        %842 = vset.pattern.permute.xlu0 0
        %843 = vperm.xlu0 %842, %v600
        %v844 = vpop.permute.xlu0 %843
        %v846 = vmul.f32 %v832, %v839
        %v847 = vmul.f32 %v833, %v839
        %v848 = vmul.f32 %v834, %v844
        %v849 = vmul.f32 %v835, %v844
        %851 = vset.pattern.permute.xlu0 0
        %852 = vperm.xlu0 %851, %v601
        %v853 = vpop.permute.xlu0 %852
        %856 = vset.pattern.permute.xlu0 0
        %857 = vperm.xlu0 %856, %v602
        %v858 = vpop.permute.xlu0 %857
        %v860 = vadd.f32 %v846, %v853
        %v861 = vadd.f32 %v847, %v853
        %v862 = vadd.f32 %v848, %v858
        %v863 = vadd.f32 %v849, %v858
        %v864 = vmax.f32 %v860, 0.0
        %v865 = vmax.f32 %v861, 0.0
        %v866 = vmax.f32 %v862, 0.0
        %v867 = vmax.f32 %v863, 0.0
        %868 = vst [vmem:[%s284] sm:$0xff] %v864
        %869 = vst [vmem:[%s284 + $0x8] sm:$0xff] %v865
        %870 = vst [vmem:[%s284 + $0x10] sm:$0xff] %v866
        %871 = vst [vmem:[%s284 + $0x18] sm:$0xff] %v867
        %s872 = sand.u32 %s163, 1
        %s873 = scalar_lea.sflag [#allocation4], %s872
        %s874 = sand.u32 %s163, 1
        %s875 = smul.addr %s874, 32
        %s876 = scalar_lea.vmem [#allocation7], %s875
        // Predicated region
        $region53: #{tpu_custom_call.1} parent=43 // pred_check
          %p877 = pneg %p173
        $region54: #{tpu_custom_call.1} parent=43 // pred_check_branch
          %879 = sbr.rel (%p877) target = $region56
        $region55: #{tpu_custom_call.1} parent=43 // pred_region
          %s881 = ssub.s32 512, 512
          %882 = vsyncadd %s873, %s881
          %s883 = smul.addr %s24, 4
          %s884 = smul.addr %s883, 128
          %s885 = scalar_lea.hbm %s6, %s884
          %s886 = sshll.u32 %s876, 4
          %s887 = int_to_ptr.vmem [resolvable:$true] %s886
          %892 = dma.vmem_to_hbm [thread:$0]  %s887, 512, %s885, %s873, 256, 256, 16
        $region56: #{tpu_custom_call.1} parent=43 // pred_fallthru
          _
      $region44: #{tpu_custom_call.1} parent=5 // pred_fallthru
        _
      %p893 = scmp.le.s32.totalorder 2, %s19
      // Predicated region
      $region57: #{tpu_custom_call.1} parent=5 // pred_check
        %p894 = pneg %p893
      $region58: #{tpu_custom_call.1} parent=5 // pred_check_branch
        %896 = sbr.rel (%p894) target = $region60
      $region59: #{tpu_custom_call.1} parent=5 // pred_region
        %s897 = ssub.s32 %s19, 2
        // Predicated region
        $region61: #{tpu_custom_call.1} parent=59 // pred_check
          %p898 = pneg %p179
        $region62: #{tpu_custom_call.1} parent=59 // pred_check_branch
          %900 = sbr.rel (%p898) target = $region64
        $region63: #{tpu_custom_call.1} parent=59 // pred_region
          %s901 = sand.u32 %s164, 1
          %s902 = scalar_lea.sflag [#allocation4], %s901
          %s903 = sand.u32 %s164, 1
          %s904 = smul.addr %s903, 32
          %s905 = scalar_lea.vmem [#allocation7], %s904
          %906 = dma.done %s902, 512
        $region64: #{tpu_custom_call.1} parent=59 // pred_fallthru
          _
      $region60: #{tpu_custom_call.1} parent=5 // pred_fallthru
        _
    $region6: #{tpu_custom_call.1} parent=1 // loop_footer
      %s23 = sadd.s32 1, %s19
    $region7: #{tpu_custom_call.1} parent=1 // loop_footer_branch
      %18 = sbr.rel target = $region3
    $region8: #{tpu_custom_call.1} parent=1 // loop_exit
      _
    %907 = vsyncpa [#allocation3], 1
    %s908 = scalar_lea.sflag [#allocation3], 1
    %909 = vsyncpa %s908, 1
    %910 = vsyncpa [#allocation6], 1
    %911 = vsyncpa [#allocation4], 1
    %s912 = scalar_lea.sflag [#allocation4], 1
    %913 = vsyncpa %s912, 1

</llo_original>
